<compile_context>
chip_gen: v5e
topology: v5e:2x2
jax: 0.10.0
libtpu: 0.0.40
codegen_flags: <defaults>
</compile_context>

<pallas_src>
import jax
import jax.numpy as jnp
from jax.experimental import pallas as pl
from jax.experimental.pallas import tpu as pltpu

_LANE = 128
_SUBLANE = 8
_TW_CAP = 4096                       # review: 2048-4096 pays off for long W
_BUF_BUDGET = 16 * 1024 * 1024       # double-buffered in+out blocks (all gens)


def _round_up(x, m):
    return ((x + m - 1) // m) * m


def _is_v7x():
    try:
        kind = jax.devices()[0].device_kind.lower().replace(" ", "")
    except Exception:
        return False
    return "v7" in kind or "tpu7" in kind


def _block_vmem_bytes(bb, c, tw, itemsize):
    """VMEM bytes one (input block + output block) pair really occupies.

    VMEM buffers are padded to (sublane, lane) tiles on their two minor dims,
    so e.g. a (TW, 4) f32 output block actually occupies (TW, 128) — this
    matters when budgeting tiles for narrow-C inputs.
    """
    sub = _SUBLANE * max(1, 4 // max(1, itemsize))     # 8 for f32, 16 for bf16
    in_b = bb * _round_up(c, sub) * _round_up(tw, _LANE) * itemsize
    out_b = bb * _round_up(tw, sub) * _round_up(c, _LANE) * itemsize
    return in_b + out_b


def _plan(B, C, W, itemsize):
    """Pick (batch_block, tile_w).

    batch_block == B -> folded path: every block carries the whole batch and
                        the grid is 1-D over W tiles (large DMAs even when the
                        per-batch slice is small).
    batch_block == 1 -> per-batch path: grid (B, W-tiles), used when B*C is
                        too large for full-batch blocks.
    """
    def _max_tw(bb):
        tw = _LANE
        while tw < _TW_CAP and 2 * _block_vmem_bytes(bb, C, 2 * tw, itemsize) <= _BUF_BUDGET:
            tw *= 2
        return tw

    fold = 2 * _block_vmem_bytes(B, C, _LANE, itemsize) <= _BUF_BUDGET
    bb = B if fold else 1
    tw = _max_tw(bb)
    if W <= tw:
        tw = W           # full-extent tile: exempt from 128 alignment
    return bb, tw


def _im2seq_kernel_folded(x_ref, o_ref):
    # x_ref: (Bb, C, TW) -> o_ref: (Bb, TW, C).
    # Unrolled per-batch 2-D transposes (Bb is small by construction of the
    # VMEM budget) keep Mosaic on the plain XLU transpose path.
    for b in range(x_ref.shape[0]):
        o_ref[b] = x_ref[b].T


def _im2seq_kernel_per_batch(x_ref, o_ref):
    # Batch dim squeezed out of the block: x_ref (C, TW) -> o_ref (TW, C).
    o_ref[...] = x_ref[...].T


def im2seq(x, *, tile_w=None, batch_fold=None):
    """PyTorch Im2Seq forward: (B, C, 1, W) -> (B, W, C), same dtype.

    tile_w / batch_fold are test / tuning overrides; defaults are derived from
    the VMEM budget.
    """
    B, C, H, W = x.shape
    assert H == 1, "Im2Seq requires H == 1"
    itemsize = jnp.dtype(x.dtype).itemsize

    # Drop the singleton H axis (pure metadata reshape, no HBM traffic).
    x3 = x.reshape(B, C, W)

    bb, tw = _plan(B, C, W, itemsize)
    if batch_fold is not None:
        bb = B if batch_fold else 1
    if tile_w is not None:
        tw = min(tile_w, W)
    assert tw == W or tw % _LANE == 0, "W tile must be 128-aligned or full-extent"

    n_w = pl.cdiv(W, tw)     # ragged last tile handled by boundary blocks
    v7x = _is_v7x()

    # v7x: one extra input buffer hides DMA issue latency behind the much
    # shorter per-step time at 3.2 TB/s HBM.  Gated -> no-op on v5e/v6e.
    in_kwargs = {"pipeline_mode": pl.Buffered(3)} if v7x else {}

    if bb == B:
        # Folded path: 1-D grid over W tiles; each block carries the full batch.
        grid = (n_w,)
        in_specs = [pl.BlockSpec((B, C, tw), lambda w: (0, 0, w), **in_kwargs)]
        out_specs = pl.BlockSpec((B, tw, C), lambda w: (0, w, 0))
        kernel = _im2seq_kernel_folded
    else:
        # Per-batch path (B*C too large to fold the whole batch into one block).
        grid = (B, n_w)
        in_specs = [pl.BlockSpec((pl.Squeezed(), C, tw), lambda b, w: (b, 0, w),
                                 **in_kwargs)]
        out_specs = pl.BlockSpec((pl.Squeezed(), tw, C), lambda b, w: (b, w, 0))
        kernel = _im2seq_kernel_per_batch

    # Only CORE_PARALLEL actually splits the grid across v7x's two TensorCores;
    # plain "parallel" semantics do not change codegen on any current chip.
    if v7x and grid[0] >= 2:
        semantics = (pltpu.CORE_PARALLEL,) + (pltpu.PARALLEL,) * (len(grid) - 1)
    else:
        semantics = ("parallel",) * len(grid)

    # Explicit VMEM limit: v5e's scoped default is only 16 MiB; the budgeted
    # blocks (<= 16 MiB double-buffered) plus compiler scratch fit in 32 MiB on
    # every generation.  For pathologically wide C the limit scales up instead
    # of silently failing at the scoped default.
    # TODO(synk): tile C on a third grid axis (128-aligned chunks) once C grows
    # past ~10K f32 channels, where even a 128-wide W tile no longer fits.
    need = 2 * _block_vmem_bytes(bb, C, tw, itemsize)
    vmem_limit = int(max(32 * 1024 * 1024, need + 4 * 1024 * 1024))

    return pl.pallas_call(
        kernel,
        out_shape=jax.ShapeDtypeStruct((B, W, C), x.dtype),
        grid_spec=pltpu.PrefetchScalarGridSpec(
            num_scalar_prefetch=0,
            grid=grid,
            in_specs=in_specs,
            out_specs=out_specs,
        ),
        compiler_params=pltpu.CompilerParams(
            dimension_semantics=semantics,
            vmem_limit_bytes=vmem_limit,
        ),
        cost_estimate=pl.CostEstimate(
            flops=0,
            transcendentals=0,
            bytes_accessed=2 * B * C * W * itemsize,
        ),
    )(x3)


def _reference(x):
    # Plain-JAX equivalent of the PyTorch forward.
    return jnp.transpose(x.squeeze(2), (0, 2, 1))


if __name__ == "__main__":
    key = jax.random.PRNGKey(0)

    # 1) Small shape consistent with the module (single-tile, batch-folded path).
    B, C, H, W = 2, 4, 1, 16
    x = jax.random.normal(key, (B, C, H, W), dtype=jnp.float32)
    y = jax.block_until_ready(im2seq(x))
    assert y.shape == (B, W, C), y.shape
    assert y.dtype == x.dtype
    assert jnp.array_equal(y, _reference(x)), "mismatch (small, folded)"

    # 2) Multi-tile ragged W, batch-folded path (no pad / slice round trips).
    x2 = jax.random.normal(jax.random.PRNGKey(0), (2, 8, 1, 300), dtype=jnp.float32)
    y2 = jax.block_until_ready(im2seq(x2, tile_w=128))
    assert y2.shape == (2, 300, 8), y2.shape
    assert jnp.array_equal(y2, _reference(x2)), "mismatch (ragged, folded)"

    # 3) Per-batch fallback path (taken automatically when B*C is too large).
    y3 = jax.block_until_ready(im2seq(x2, tile_w=128, batch_fold=False))
    assert jnp.array_equal(y3, _reference(x2)), "mismatch (ragged, per-batch)"

    print("KERNEL_OK")
</pallas_src>

<mosaic_0001>
module attributes {stable_mosaic.version = 11 : i64} {
  func.func @_im2seq_kernel_folded(%arg0: i32, %arg1: memref<2x4x16xf32, #tpu.memory_space<vmem>>, %arg2: memref<2x16x4xf32, #tpu.memory_space<vmem>>) attributes {dimension_semantics = [#tpu.dimension_semantics<parallel>], iteration_bounds = array<i64: 1>, scalar_prefetch = 0 : i64, scratch_operands = 0 : i64, tpu.core_type = #tpu.core_type<tc>, window_params = [{transform_indices = @transform_0, window_bounds = array<i64: 2, 4, 16>}, {transform_indices = @transform_1, window_bounds = array<i64: 2, 16, 4>}]} {
    %c0 = arith.constant 0 : index
    %c0_0 = arith.constant 0 : index
    %c0_1 = arith.constant 0 : index
    %0 = vector.load %arg1[%c0, %c0_0, %c0_1] : memref<2x4x16xf32, #tpu.memory_space<vmem>>, vector<1x4x16xf32>
    %1 = vector.shape_cast %0 : vector<1x4x16xf32> to vector<4x16xf32>
    %2 = tpu.transpose %1, [1, 0] : vector<4x16xf32> -> vector<16x4xf32>
    %c0_2 = arith.constant 0 : index
    %c0_3 = arith.constant 0 : index
    %c0_4 = arith.constant 0 : index
    %3 = vector.load %arg2[%c0_2, %c0_3, %c0_4] : memref<2x16x4xf32, #tpu.memory_space<vmem>>, vector<1x16x4xf32>
    %4 = vector.shape_cast %3 : vector<1x16x4xf32> to vector<16x4xf32>
    %5 = vector.shape_cast %2 : vector<16x4xf32> to vector<1x16x4xf32>
    tpu.vector_store %arg2[%c0_2, %c0_3, %c0_4], %5 {strides = array<i32>} : memref<2x16x4xf32, #tpu.memory_space<vmem>>, vector<1x16x4xf32>,
    %c1 = arith.constant 1 : index
    %c0_5 = arith.constant 0 : index
    %c0_6 = arith.constant 0 : index
    %6 = vector.load %arg1[%c1, %c0_5, %c0_6] : memref<2x4x16xf32, #tpu.memory_space<vmem>>, vector<1x4x16xf32>
    %7 = vector.shape_cast %6 : vector<1x4x16xf32> to vector<4x16xf32>
    %8 = tpu.transpose %7, [1, 0] : vector<4x16xf32> -> vector<16x4xf32>
    %c1_7 = arith.constant 1 : index
    %c0_8 = arith.constant 0 : index
    %c0_9 = arith.constant 0 : index
    %9 = vector.load %arg2[%c1_7, %c0_8, %c0_9] : memref<2x16x4xf32, #tpu.memory_space<vmem>>, vector<1x16x4xf32>
    %10 = vector.shape_cast %9 : vector<1x16x4xf32> to vector<16x4xf32>
    %11 = vector.shape_cast %8 : vector<16x4xf32> to vector<1x16x4xf32>
    tpu.vector_store %arg2[%c1_7, %c0_8, %c0_9], %11 {strides = array<i32>} : memref<2x16x4xf32, #tpu.memory_space<vmem>>, vector<1x16x4xf32>,
    return
  }
  func.func @transform_0(%arg0: i32) -> (i32, i32, i32) {
    %c0_i32 = arith.constant 0 : i32
    %c0_i32_0 = arith.constant 0 : i32
    %c0_i32_1 = arith.constant 0 : i32
    return %c0_i32, %c0_i32_0, %arg0 : i32, i32, i32
  }
  func.func @transform_1(%arg0: i32) -> (i32, i32, i32) {
    %c0_i32 = arith.constant 0 : i32
    %c0_i32_0 = arith.constant 0 : i32
    %c0_i32_1 = arith.constant 0 : i32
    return %c0_i32, %arg0, %c0_i32_0 : i32, i32, i32
  }
}

</mosaic_0001>

<llo_original>
// kernel: tpu_custom_call.1
$region0: #{tpu_custom_call.1}
  #allocation0 [shape = 'u32[]', space=smem, size = 0x4, offset = 0x4, fixed_abs, tag = 'smem constant byte address 0x4 - core index']
  #allocation1 [shape = 'u32[72,128]{1,0:T(1,128)}', space=vmem, size = 0x9000, scoped, tag = 'internal scratch']
  %s0 = inlined_call_operand.hbm [shape: f32[2,4,16], index: 0, kind: input, shape index: {}]
  %s1 = inlined_call_operand.vmem [shape: f32[2,16,4], index: 1, kind: output, shape index: {}]
  %s2 = sld [smem:[#allocation0]]
  $region18: #{tpu_custom_call.1} parent=0
    _
  %s4 = ssub.s32 1, %s2
  %s5 = scalar_select 0, %s4, %s2
  $region1: #{tpu_custom_call.1} parent=0
    #allocation2 [shape = 'u8[4096]{0}', space=vmem, size = 0x1000, scoped, tag = 'input window, operand 0, single buffered']
    #allocation3 [shape = 's32[1]{0}', space=sflag, size = 0x4, scoped, tag = 'scoped memory for tpu_custom_call.1']
    %6 = vsyncpa [#allocation3], 0
    // Predicated region
    $region2: #{tpu_custom_call.1} parent=1 // pred_check
      _
    $region3: #{tpu_custom_call.1} parent=1 // pred_check_branch
      %8 = sbr.rel (0) target = $region5
    $region4: #{tpu_custom_call.1} parent=1 // pred_region
      %10 = vsyncadd [#allocation3], 0
      %s11 = sshll.u32 %s0, 4
      %s12 = int_to_ptr.hbm [resolvable:$true] %s11
      %s13 = sshll.u32 [#allocation2], 4
      %s14 = int_to_ptr.vmem [resolvable:$true] %s13
      %19 = dma.hbm_to_vmem [thread:$0]  %s12, 128, %s14, [#allocation3], 64, 64, 4
    $region5: #{tpu_custom_call.1} parent=1 // pred_fallthru
      _
    // Predicated region
    $region6: #{tpu_custom_call.1} parent=1 // pred_check
      _
    $region7: #{tpu_custom_call.1} parent=1 // pred_check_branch
      %21 = sbr.rel (0) target = $region9
    $region8: #{tpu_custom_call.1} parent=1 // pred_region
      %23 = dma.done [#allocation3], 128
    $region9: #{tpu_custom_call.1} parent=1 // pred_fallthru
      _
    %v24 = vld [vmem:[#allocation2] sm:$0xf]
    %25 = vxpose.xlu0.b32.start [1/16] %v24, 128
    %26 = vxpose.xlu0.b32.cont [2/16] 0.0, 128
    %27 = vxpose.xlu0.b32.cont [3/16] 0.0, 128
    %28 = vxpose.xlu0.b32.cont [4/16] 0.0, 128
    %29 = vxpose.xlu0.b32.cont [5/16] 0.0, 128
    %30 = vxpose.xlu0.b32.cont [6/16] 0.0, 128
    %31 = vxpose.xlu0.b32.cont [7/16] 0.0, 128
    %32 = vxpose.xlu0.b32.cont [8/16] 0.0, 128
    %33 = vxpose.xlu0.b32.cont [9/16] 0.0, 128
    %34 = vxpose.xlu0.b32.cont [10/16] 0.0, 128
    %35 = vxpose.xlu0.b32.cont [11/16] 0.0, 128
    %36 = vxpose.xlu0.b32.cont [12/16] 0.0, 128
    %37 = vxpose.xlu0.b32.cont [13/16] 0.0, 128
    %38 = vxpose.xlu0.b32.cont [14/16] 0.0, 128
    %39 = vxpose.xlu0.b32.cont [15/16] 0.0, 128
    %40 = vxpose.xlu0.b32.end [16/16] 0.0, 128
    %v41 = vpop.trf.xlu0
    %v42 = vpop.trf.xlu0
    %v43 = vpop.trf.xlu0
    %v44 = vpop.trf.xlu0
    %v45 = vpop.trf.xlu0
    %v46 = vpop.trf.xlu0
    %v47 = vpop.trf.xlu0
    %v48 = vpop.trf.xlu0
    %v49 = vpop.trf.xlu0
    %v50 = vpop.trf.xlu0
    %v51 = vpop.trf.xlu0
    %v52 = vpop.trf.xlu0
    %v53 = vpop.trf.xlu0
    %v54 = vpop.trf.xlu0
    %v55 = vpop.trf.xlu0
    %v56 = vpop.trf.xlu0
    %vm57 = vcmask 31744
    %58 = vst.msk [vmem:[%s1] sm:$0xff] %vm57, %v41
    %59 = vst.msk [vmem:[%s1 + $0x8] sm:$0xff] %vm57, %v42
    %s60 = scalar_lea.vmem [#allocation2], 4
    %v61 = vld [vmem:[%s60] sm:$0xf]
    %62 = vxpose.xlu0.b32.start [1/16] %v61, 128
    %63 = vxpose.xlu0.b32.cont [2/16] 0.0, 128
    %64 = vxpose.xlu0.b32.cont [3/16] 0.0, 128
    %65 = vxpose.xlu0.b32.cont [4/16] 0.0, 128
    %66 = vxpose.xlu0.b32.cont [5/16] 0.0, 128
    %67 = vxpose.xlu0.b32.cont [6/16] 0.0, 128
    %68 = vxpose.xlu0.b32.cont [7/16] 0.0, 128
    %69 = vxpose.xlu0.b32.cont [8/16] 0.0, 128
    %70 = vxpose.xlu0.b32.cont [9/16] 0.0, 128
    %71 = vxpose.xlu0.b32.cont [10/16] 0.0, 128
    %72 = vxpose.xlu0.b32.cont [11/16] 0.0, 128
    %73 = vxpose.xlu0.b32.cont [12/16] 0.0, 128
    %74 = vxpose.xlu0.b32.cont [13/16] 0.0, 128
    %75 = vxpose.xlu0.b32.cont [14/16] 0.0, 128
    %76 = vxpose.xlu0.b32.cont [15/16] 0.0, 128
    %77 = vxpose.xlu0.b32.end [16/16] 0.0, 128
    %v78 = vpop.trf.xlu0
    %v79 = vpop.trf.xlu0
    %v80 = vpop.trf.xlu0
    %v81 = vpop.trf.xlu0
    %v82 = vpop.trf.xlu0
    %v83 = vpop.trf.xlu0
    %v84 = vpop.trf.xlu0
    %v85 = vpop.trf.xlu0
    %v86 = vpop.trf.xlu0
    %v87 = vpop.trf.xlu0
    %v88 = vpop.trf.xlu0
    %v89 = vpop.trf.xlu0
    %v90 = vpop.trf.xlu0
    %v91 = vpop.trf.xlu0
    %v92 = vpop.trf.xlu0
    %v93 = vpop.trf.xlu0
    %s94 = scalar_lea.vmem %s1, 16
    %95 = vst.msk [vmem:[%s94] sm:$0xff] %vm57, %v78
    %96 = vst.msk [vmem:[%s94 + $0x8] sm:$0xff] %vm57, %v79
    // Predicated region
    $region10: #{tpu_custom_call.1} parent=1 // pred_check
      _
    $region11: #{tpu_custom_call.1} parent=1 // pred_check_branch
      %98 = sbr.rel (0) target = $region13
    $region12: #{tpu_custom_call.1} parent=1 // pred_region
      _
    $region13: #{tpu_custom_call.1} parent=1 // pred_fallthru
      _
    // Predicated region
    $region14: #{tpu_custom_call.1} parent=1 // pred_check
      _
    $region15: #{tpu_custom_call.1} parent=1 // pred_check_branch
      %100 = sbr.rel (0) target = $region17
    $region16: #{tpu_custom_call.1} parent=1 // pred_region
      _
    $region17: #{tpu_custom_call.1} parent=1 // pred_fallthru
      _
    %101 = vsyncpa [#allocation3], 1

</llo_original>
